<compile_context>
chip_gen: v5e
topology: v5e:2x2
jax: 0.10.0
libtpu: 0.0.40
codegen_flags: <defaults>
</compile_context>

<pallas_src>
import functools

import jax
import jax.numpy as jnp
from jax import lax
from jax.experimental import pallas as pl
from jax.experimental.pallas import tpu as pltpu


def _xca_fused_kernel(x_ref, wqkv_ref, temp_ref, bias_ref, projw_ref,
                      projb_ref, o_ref, *, tokens_per_batch, batch_tile):
    # Block shapes: x (TB*N, C); wqkv (C, 3C) bf16; temp/proj_b (1, C) f32;
    # bias (C, C) f32; proj_w (C, C) bf16; out (TB*N, C).
    TBN, C = x_ref.shape
    N = tokens_per_batch
    TB = batch_tile
    eps2 = jnp.float32(1e-24)          # F.normalize eps = 1e-12, squared.

    # ---- fused qkv projection on the whole (TB*N, C) slab -----------------
    # bf16 MXU operands, f32 accumulation.  bias=False -> no bias add.
    xb = x_ref[...].astype(jnp.bfloat16)
    qkv = jnp.dot(xb, wqkv_ref[...],
                  preferred_element_type=jnp.float32)            # (TB*N, 3C)
    q = qkv[:, :C].reshape(TB, N, C)                             # f32
    k = qkv[:, C:2 * C].reshape(TB, N, C)
    v = qkv[:, 2 * C:].reshape(TB, N, C)

    # ---- F.normalize(dim=-1) over the token axis, per batch element -------
    #   x / max(||x||, eps) == x * rsqrt(max(sum(x^2), eps^2))
    q_ss = jnp.sum(q * q, axis=1, keepdims=True)                 # (TB, 1, C)
    k_ss = jnp.sum(k * k, axis=1, keepdims=True)
    inv_q = lax.rsqrt(jnp.maximum(q_ss, eps2))
    inv_k = lax.rsqrt(jnp.maximum(k_ss, eps2))

    # Per-head temperature (row scaling of the logits) folded into q's
    # per-channel scale — a free lane-broadcast multiply.
    temp = temp_ref[...].astype(jnp.float32).reshape(1, 1, C)
    qn = (q * (inv_q * temp)).astype(jnp.bfloat16)               # (TB, N, C)
    kn = (k * inv_k).astype(jnp.bfloat16)

    # ---- channel-channel covariance, all heads + all TB batches at once ---
    # Contract the token axis; TB is a batch dim of the MXU contraction.
    logits = lax.dot_general(qn, kn, (((1,), (1,)), ((0,), (0,))),
                             preferred_element_type=jnp.float32)  # (TB, C, C)

    # Per-head softmax == softmax with a resident block-diagonal additive
    # bias (0 on-block, -1e30 off-block).  exp(masked - m) is exactly 0 on
    # the off-block entries, so no extra select is needed.
    masked = logits + bias_ref[...]                               # (TB, C, C)
    m = jnp.max(masked, axis=-1, keepdims=True)                   # (TB, C, 1)
    e = jnp.exp(masked - m)
    denom = jnp.sum(e, axis=-1, keepdims=True)
    attn = e * pl.reciprocal(denom, approx=True)                  # (TB, C, C)
    # attn_drop(p=0.0) is identity.

    # ---- attn @ v emitted directly in (tokens, channels) layout -----------
    #   out[b, n, c] = sum_d attn[b, c, d] * v[b, n, d]
    out = lax.dot_general(v.astype(jnp.bfloat16), attn.astype(jnp.bfloat16),
                          (((2,), (2,)), ((0,), (0,))),
                          preferred_element_type=jnp.float32)     # (TB, N, C)

    # ---- output projection (+ bias) on the flattened slab ------------------
    y = jnp.dot(out.reshape(TBN, C).astype(jnp.bfloat16), projw_ref[...],
                preferred_element_type=jnp.float32)               # (TB*N, C)
    y = y + projb_ref[...].astype(jnp.float32)
    # proj_drop(p=0.0) is identity.
    o_ref[...] = y.astype(o_ref.dtype)


def _pick_batch_tile(batch):
    # Largest divisor of B (capped at 32) that keeps the grid length >= 2
    # when possible, so v7x's two TensorCores can split the parallel axis.
    cap = min(32, batch if batch < 2 else max(1, batch // 2))
    for d in range(cap, 0, -1):
        if batch % d == 0:
            return d
    return 1


def xca_forward(x, params, nb_heads, batch_tile=None):
    B, N, C = x.shape
    assert C % nb_heads == 0
    Ch = C // nb_heads

    tb = batch_tile if batch_tile is not None else _pick_batch_tile(B)
    assert B % tb == 0
    grid_len = B // tb

    # bf16 MXU operands; f32 accumulation happens inside the kernel dots.
    w_qkv = params["qkv_w"].astype(jnp.bfloat16)          # (C, 3C), (in, out)
    proj_w = params["proj_w"].astype(jnp.bfloat16)        # (C, C)
    proj_b = params["proj_b"].reshape(1, C).astype(jnp.float32)

    # Per-channel temperature row (head h's value repeated Ch times).
    temp_full = jnp.repeat(
        params["temperature"].reshape(nb_heads).astype(jnp.float32),
        Ch, total_repeat_length=C).reshape(1, C)

    # Block-diagonal additive softmax bias: 0 on-block, -1e30 off-block.
    head = jnp.arange(C, dtype=jnp.int32) // Ch
    attn_bias = jnp.where(head[:, None] == head[None, :],
                          0.0, -1e30).astype(jnp.float32)          # (C, C)

    # Flatten batch/token axes in the wrapper (free, contiguous reshape) so
    # each grid step gets one large lane/sublane-dense (TB*N, C) slab.
    x2 = x.reshape(B * N, C)

    kernel = functools.partial(_xca_fused_kernel,
                               tokens_per_batch=N, batch_tile=tb)

    out2 = pl.pallas_call(
        kernel,
        out_shape=jax.ShapeDtypeStruct((B * N, C), x.dtype),
        grid_spec=pltpu.PrefetchScalarGridSpec(
            num_scalar_prefetch=0,
            grid=(grid_len,),
            in_specs=[
                pl.BlockSpec((tb * N, C), lambda g: (g, 0)),   # x slab
                pl.BlockSpec((C, 3 * C), lambda g: (0, 0)),    # fused qkv w
                pl.BlockSpec((1, C), lambda g: (0, 0)),        # temperature
                pl.BlockSpec((C, C), lambda g: (0, 0)),        # softmax bias
                pl.BlockSpec((C, C), lambda g: (0, 0)),        # proj weight
                pl.BlockSpec((1, C), lambda g: (0, 0)),        # proj bias
            ],
            out_specs=pl.BlockSpec((tb * N, C), lambda g: (g, 0)),
        ),
        compiler_params=pltpu.CompilerParams(
            dimension_semantics=("parallel",),
            vmem_limit_bytes=32 * 1024 * 1024),
    )(x2, w_qkv, temp_full, attn_bias, proj_w, proj_b)

    return out2.reshape(B, N, C)


# ---------------------------------------------------------------------------
# Pure-JAX reference (mirrors the PyTorch forward) for correctness checking.
# ---------------------------------------------------------------------------
def xca_reference(x, params, nb_heads):
    B, N, C = x.shape
    Ch = C // nb_heads
    qkv = x @ params["qkv_w"]                                  # bias=False
    qkv = qkv.reshape(B, N, 3, nb_heads, Ch)
    qkv = jnp.transpose(qkv, (2, 0, 3, 1, 4))
    q, k, v = qkv[0], qkv[1], qkv[2]
    q = jnp.transpose(q, (0, 1, 3, 2))
    k = jnp.transpose(k, (0, 1, 3, 2))
    v = jnp.transpose(v, (0, 1, 3, 2))
    eps = 1e-12
    q = q / jnp.maximum(jnp.linalg.norm(q, axis=-1, keepdims=True), eps)
    k = k / jnp.maximum(jnp.linalg.norm(k, axis=-1, keepdims=True), eps)
    temp = params["temperature"].reshape(1, nb_heads, 1, 1)
    attn = jnp.einsum("bhcn,bhdn->bhcd", q, k) * temp
    attn = jax.nn.softmax(attn, axis=-1)
    out = jnp.einsum("bhcd,bhdn->bhcn", attn, v)
    out = jnp.transpose(out, (0, 3, 1, 2)).reshape(B, N, C)
    return out @ params["proj_w"] + params["proj_b"]


if __name__ == "__main__":
    # Small shapes consistent with the module: d_model=32, nb_heads=8.
    # B=8 exercises batch tiling (TB=4, grid length 2).
    B, N, C, H = 8, 16, 32, 8

    key = jax.random.PRNGKey(0)
    kx, kqkv, kproj_w, kproj_b = jax.random.split(key, 4)

    x = jax.random.normal(kx, (B, N, C), dtype=jnp.float32)

    params = {
        # torch Linear(d_model, 3*d_model, bias=False), stored as (in, out)
        "qkv_w": jax.random.normal(kqkv, (C, 3 * C), dtype=jnp.float32) * 0.02,
        # torch Linear(d_model, d_model) with bias
        "proj_w": jax.random.normal(kproj_w, (C, C), dtype=jnp.float32) * 0.02,
        "proj_b": jax.random.normal(kproj_b, (C,), dtype=jnp.float32) * 0.02,
        # nn.Parameter(torch.ones(nb_heads, 1, 1)) flattened to (H,);
        # non-uniform values to exercise the per-head temperature folding.
        "temperature": jnp.linspace(0.5, 1.5, H, dtype=jnp.float32),
    }

    out = jax.block_until_ready(xca_forward(x, params, H))
    ref = xca_reference(x, params, H)

    assert out.shape == (B, N, C)
    # Matmul operands are bf16 (f32 accumulation) and the softmax denominator
    # uses the approximate EUP reciprocal, so tolerance is loosened slightly
    # vs. the all-f32 version.
    max_err = jnp.max(jnp.abs(out - ref))
    assert jnp.allclose(out, ref, atol=2e-2, rtol=2e-2), (
        f"mismatch vs reference: max abs err {max_err:.3e}")

    print("KERNEL_OK")
</pallas_src>

<mosaic_0001>
module attributes {stable_mosaic.version = 11 : i64} {
  func.func @_xca_fused_kernel(%arg0: i32, %arg1: memref<64x32xf32, #tpu.memory_space<vmem>>, %arg2: memref<32x96xbf16, #tpu.memory_space<vmem>>, %arg3: memref<1x32xf32, #tpu.memory_space<vmem>>, %arg4: memref<32x32xf32, #tpu.memory_space<vmem>>, %arg5: memref<32x32xbf16, #tpu.memory_space<vmem>>, %arg6: memref<1x32xf32, #tpu.memory_space<vmem>>, %arg7: memref<64x32xf32, #tpu.memory_space<vmem>>) attributes {dimension_semantics = [#tpu.dimension_semantics<parallel>], iteration_bounds = array<i64: 2>, scalar_prefetch = 0 : i64, scratch_operands = 0 : i64, tpu.core_type = #tpu.core_type<tc>, window_params = [{transform_indices = @transform_0, window_bounds = array<i64: 64, 32>}, {pipeline_mode = #tpu.pipeline_mode<synchronous>, transform_indices = @transform_1, window_bounds = array<i64: 32, 96>}, {pipeline_mode = #tpu.pipeline_mode<synchronous>, transform_indices = @transform_2, window_bounds = array<i64: 1, 32>}, {pipeline_mode = #tpu.pipeline_mode<synchronous>, transform_indices = @transform_3, window_bounds = array<i64: 32, 32>}, {pipeline_mode = #tpu.pipeline_mode<synchronous>, transform_indices = @transform_4, window_bounds = array<i64: 32, 32>}, {pipeline_mode = #tpu.pipeline_mode<synchronous>, transform_indices = @transform_5, window_bounds = array<i64: 1, 32>}, {transform_indices = @transform_6, window_bounds = array<i64: 64, 32>}]} {
    %c0 = arith.constant 0 : index
    %c0_0 = arith.constant 0 : index
    %0 = vector.load %arg1[%c0, %c0_0] : memref<64x32xf32, #tpu.memory_space<vmem>>, vector<64x32xf32>
    %1 = arith.truncf %0 : vector<64x32xf32> to vector<64x32xbf16>
    %c0_1 = arith.constant 0 : index
    %c0_2 = arith.constant 0 : index
    %2 = vector.load %arg2[%c0_1, %c0_2] : memref<32x96xbf16, #tpu.memory_space<vmem>>, vector<32x96xbf16>
    %cst = arith.constant dense<0.000000e+00> : vector<64x96xf32>
    %3 = tpu.matmul %1, %2, %cst {dimension_numbers = #tpu.dot_dimension_numbers<[1], [0], [0], [1], [0, 0, 1, 1], [], []>} : vector<64x32xbf16>, vector<32x96xbf16>, vector<64x96xf32> -> vector<64x96xf32>
    %4 = vector.extract_strided_slice %3 {offsets = [0, 0], sizes = [64, 32], strides = [1, 1]} : vector<64x96xf32> to vector<64x32xf32>
    %5 = vector.shape_cast %4 : vector<64x32xf32> to vector<4x16x32xf32>
    %6 = vector.extract_strided_slice %3 {offsets = [0, 32], sizes = [64, 32], strides = [1, 1]} : vector<64x96xf32> to vector<64x32xf32>
    %7 = vector.shape_cast %6 : vector<64x32xf32> to vector<4x16x32xf32>
    %8 = vector.extract_strided_slice %3 {offsets = [0, 64], sizes = [64, 32], strides = [1, 1]} : vector<64x96xf32> to vector<64x32xf32>
    %9 = vector.shape_cast %8 : vector<64x32xf32> to vector<4x16x32xf32>
    %10 = arith.mulf %5, %5 : vector<4x16x32xf32>
    %cst_3 = arith.constant dense<0.000000e+00> : vector<4x32xf32>
    %11 = vector.multi_reduction <add>, %10, %cst_3 [1] : vector<4x16x32xf32> to vector<4x32xf32>
    %12 = vector.shape_cast %11 : vector<4x32xf32> to vector<4x1x32xf32>
    %13 = arith.mulf %7, %7 : vector<4x16x32xf32>
    %cst_4 = arith.constant dense<0.000000e+00> : vector<4x32xf32>
    %14 = vector.multi_reduction <add>, %13, %cst_4 [1] : vector<4x16x32xf32> to vector<4x32xf32>
    %15 = vector.shape_cast %14 : vector<4x32xf32> to vector<4x1x32xf32>
    %cst_5 = arith.constant 1.000000e-24 : f32
    %16 = vector.broadcast %cst_5 : f32 to vector<4x1x32xf32>
    %17 = arith.maximumf %12, %16 : vector<4x1x32xf32>
    %18 = math.rsqrt %17 : vector<4x1x32xf32>
    %cst_6 = arith.constant 1.000000e-24 : f32
    %19 = vector.broadcast %cst_6 : f32 to vector<4x1x32xf32>
    %20 = arith.maximumf %15, %19 : vector<4x1x32xf32>
    %21 = math.rsqrt %20 : vector<4x1x32xf32>
    %c0_7 = arith.constant 0 : index
    %c0_8 = arith.constant 0 : index
    %22 = vector.load %arg3[%c0_7, %c0_8] : memref<1x32xf32, #tpu.memory_space<vmem>>, vector<1x32xf32>
    %23 = vector.shape_cast %22 : vector<1x32xf32> to vector<1x1x32xf32>
    %24 = vector.broadcast %23 : vector<1x1x32xf32> to vector<4x1x32xf32>
    %25 = arith.mulf %18, %24 : vector<4x1x32xf32>
    %26 = vector.broadcast %25 : vector<4x1x32xf32> to vector<4x16x32xf32>
    %27 = arith.mulf %5, %26 : vector<4x16x32xf32>
    %28 = arith.truncf %27 : vector<4x16x32xf32> to vector<4x16x32xbf16>
    %29 = vector.broadcast %21 : vector<4x1x32xf32> to vector<4x16x32xf32>
    %30 = arith.mulf %7, %29 : vector<4x16x32xf32>
    %31 = arith.truncf %30 : vector<4x16x32xf32> to vector<4x16x32xbf16>
    %cst_9 = arith.constant dense<0.000000e+00> : vector<4x32x32xf32>
    %32 = tpu.matmul %28, %31, %cst_9 {dimension_numbers = #tpu.dot_dimension_numbers<[1], [1], [2], [2], [0, 0, 0, 2, 1, 2], [0], [0]>} : vector<4x16x32xbf16>, vector<4x16x32xbf16>, vector<4x32x32xf32> -> vector<4x32x32xf32>
    %c0_10 = arith.constant 0 : index
    %c0_11 = arith.constant 0 : index
    %33 = vector.load %arg4[%c0_10, %c0_11] : memref<32x32xf32, #tpu.memory_space<vmem>>, vector<32x32xf32>
    %34 = vector.shape_cast %33 : vector<32x32xf32> to vector<1x32x32xf32>
    %35 = vector.broadcast %34 : vector<1x32x32xf32> to vector<4x32x32xf32>
    %36 = arith.addf %32, %35 : vector<4x32x32xf32>
    %cst_12 = arith.constant dense<0xFF800000> : vector<4x32xf32>
    %37 = vector.multi_reduction <maximumf>, %36, %cst_12 [2] : vector<4x32x32xf32> to vector<4x32xf32>
    %38 = vector.shape_cast %37 : vector<4x32xf32> to vector<4x32x1xf32>
    %39 = vector.broadcast %38 : vector<4x32x1xf32> to vector<4x32x32xf32>
    %40 = arith.subf %36, %39 : vector<4x32x32xf32>
    %41 = math.exp %40 : vector<4x32x32xf32>
    %cst_13 = arith.constant dense<0.000000e+00> : vector<4x32xf32>
    %42 = vector.multi_reduction <add>, %41, %cst_13 [2] : vector<4x32x32xf32> to vector<4x32xf32>
    %43 = vector.shape_cast %42 : vector<4x32xf32> to vector<4x32x1xf32>
    %44 = tpu.reciprocal %43 {approx = true} : vector<4x32x1xf32> -> vector<4x32x1xf32>
    %45 = vector.broadcast %44 : vector<4x32x1xf32> to vector<4x32x32xf32>
    %46 = arith.mulf %41, %45 : vector<4x32x32xf32>
    %47 = arith.truncf %9 : vector<4x16x32xf32> to vector<4x16x32xbf16>
    %48 = arith.truncf %46 : vector<4x32x32xf32> to vector<4x32x32xbf16>
    %cst_14 = arith.constant dense<0.000000e+00> : vector<4x16x32xf32>
    %49 = tpu.matmul %47, %48, %cst_14 {dimension_numbers = #tpu.dot_dimension_numbers<[2], [2], [1], [1], [0, 0, 0, 1, 1, 1], [0], [0]>} : vector<4x16x32xbf16>, vector<4x32x32xbf16>, vector<4x16x32xf32> -> vector<4x16x32xf32>
    %50 = vector.shape_cast %49 : vector<4x16x32xf32> to vector<64x32xf32>
    %51 = arith.truncf %50 : vector<64x32xf32> to vector<64x32xbf16>
    %c0_15 = arith.constant 0 : index
    %c0_16 = arith.constant 0 : index
    %52 = vector.load %arg5[%c0_15, %c0_16] : memref<32x32xbf16, #tpu.memory_space<vmem>>, vector<32x32xbf16>
    %cst_17 = arith.constant dense<0.000000e+00> : vector<64x32xf32>
    %53 = tpu.matmul %51, %52, %cst_17 {dimension_numbers = #tpu.dot_dimension_numbers<[1], [0], [0], [1], [0, 0, 1, 1], [], []>} : vector<64x32xbf16>, vector<32x32xbf16>, vector<64x32xf32> -> vector<64x32xf32>
    %c0_18 = arith.constant 0 : index
    %c0_19 = arith.constant 0 : index
    %54 = vector.load %arg6[%c0_18, %c0_19] : memref<1x32xf32, #tpu.memory_space<vmem>>, vector<1x32xf32>
    %55 = vector.broadcast %54 : vector<1x32xf32> to vector<64x32xf32>
    %56 = arith.addf %53, %55 : vector<64x32xf32>
    %c0_20 = arith.constant 0 : index
    %c0_21 = arith.constant 0 : index
    %57 = vector.load %arg7[%c0_20, %c0_21] : memref<64x32xf32, #tpu.memory_space<vmem>>, vector<64x32xf32>
    tpu.vector_store %arg7[%c0_20, %c0_21], %56 {strides = array<i32>} : memref<64x32xf32, #tpu.memory_space<vmem>>, vector<64x32xf32>,
    return
  }
  func.func @transform_0(%arg0: i32) -> (i32, i32) {
    %c0_i32 = arith.constant 0 : i32
    %c0_i32_0 = arith.constant 0 : i32
    return %arg0, %c0_i32 : i32, i32
  }
  func.func @transform_1(%arg0: i32) -> (i32, i32) {
    %c0_i32 = arith.constant 0 : i32
    %c0_i32_0 = arith.constant 0 : i32
    %c0_i32_1 = arith.constant 0 : i32
    return %c0_i32, %c0_i32_0 : i32, i32
  }
  func.func @transform_2(%arg0: i32) -> (i32, i32) {
    %c0_i32 = arith.constant 0 : i32
    %c0_i32_0 = arith.constant 0 : i32
    %c0_i32_1 = arith.constant 0 : i32
    return %c0_i32, %c0_i32_0 : i32, i32
  }
  func.func @transform_3(%arg0: i32) -> (i32, i32) {
    %c0_i32 = arith.constant 0 : i32
    %c0_i32_0 = arith.constant 0 : i32
    %c0_i32_1 = arith.constant 0 : i32
    return %c0_i32, %c0_i32_0 : i32, i32
  }
  func.func @transform_4(%arg0: i32) -> (i32, i32) {
    %c0_i32 = arith.constant 0 : i32
    %c0_i32_0 = arith.constant 0 : i32
    %c0_i32_1 = arith.constant 0 : i32
    return %c0_i32, %c0_i32_0 : i32, i32
  }
  func.func @transform_5(%arg0: i32) -> (i32, i32) {
    %c0_i32 = arith.constant 0 : i32
    %c0_i32_0 = arith.constant 0 : i32
    %c0_i32_1 = arith.constant 0 : i32
    return %c0_i32, %c0_i32_0 : i32, i32
  }
  func.func @transform_6(%arg0: i32) -> (i32, i32) {
    %c0_i32 = arith.constant 0 : i32
    %c0_i32_0 = arith.constant 0 : i32
    return %arg0, %c0_i32 : i32, i32
  }
}

</mosaic_0001>

<llo_original>
// kernel: tpu_custom_call.1
$region0: #{tpu_custom_call.1}
  #allocation0 [shape = 'u32[]', space=smem, size = 0x4, offset = 0x4, fixed_abs, tag = 'smem constant byte address 0x4 - core index']
  #allocation1 [shape = 'u32[72,128]{1,0:T(1,128)}', space=vmem, size = 0x9000, scoped, tag = 'internal scratch']
  %s0 = inlined_call_operand.vmem [shape: f32[128,32], index: 0, kind: input, shape index: {}]
  %s1 = inlined_call_operand.vmem [shape: bf16[32,96], index: 1, kind: input, shape index: {}]
  %s2 = inlined_call_operand.vmem [shape: f32[1,32], index: 2, kind: input, shape index: {}]
  %s3 = inlined_call_operand.vmem [shape: f32[32,32], index: 3, kind: input, shape index: {}]
  %s4 = inlined_call_operand.vmem [shape: bf16[32,32], index: 4, kind: input, shape index: {}]
  %s5 = inlined_call_operand.vmem [shape: f32[1,32], index: 5, kind: input, shape index: {}]
  %s6 = inlined_call_operand.vmem [shape: f32[128,32], index: 6, kind: output, shape index: {}]
  %s7 = sld [smem:[#allocation0]]
  $region57: #{tpu_custom_call.1} parent=0
    _
  %s9 = ssub.s32 1, %s7
  %s10 = scalar_select 0, %s9, %s7
  loop: start=0, step=1, limit=4
  $region2: #{tpu_custom_call.1} parent=0 // loop_pre_header
    _
  $region3: #{tpu_custom_call.1} parent=0 // loop_header
    %s12 = sphi 0, %s16
    %p13 = scmp.ge.s32.totalorder %s12, 4
    %s22 = sphi 0, %s24
    %s25 = sphi 0, %s22
    %s26 = sphi 0, %s25
    %s42 = sphi 0, %s26
    %s46 = sphi 0, %s46
    %s48 = sphi 0, %s46
    %s49 = sphi 0, %s48
    %s63 = sphi 0, %s49
    %s67 = sphi 0, %s67
    %s69 = sphi 0, %s67
    %s70 = sphi 0, %s69
    %s84 = sphi 0, %s70
    %s88 = sphi 0, %s88
    %s90 = sphi 0, %s88
    %s91 = sphi 0, %s90
    %s105 = sphi 0, %s91
    %s109 = sphi 0, %s109
    %s111 = sphi 0, %s109
    %s112 = sphi 0, %s111
    %s126 = sphi 0, %s112
    %s130 = sphi 0, %s130
    %s132 = sphi 0, %s130
    %s133 = sphi 0, %s132
    %s147 = sphi 0, %s133
    %s153 = sphi 0, %s155
    %s156 = sphi 0, %s153
    %s157 = sphi 0, %s156
    %s173 = sphi 0, %s157
  $region4: #{tpu_custom_call.1} parent=0 // loop_header_branch
    %15 = sbr.rel (%p13) target = $region8
  $region5: #{tpu_custom_call.1} parent=0 // loop_body
    %s17 = ssub.s32 %s12, 1
    %s18 = ssub.s32 %s12, 2
    %s19 = sadd.s32 %s12, 1
    %s20 = ssub.s32 %s12, %s19
    %p21 = scmp.eq.s32.totalorder %s20, 0
    %s23 = sadd.s32 %s22, 1
    %s24 = scalar_select %p21, %s22, %s23
    %p27 = pneg %p21
    %p28 = scmp.eq.s32.totalorder %s12, 1
    %p29 = por %p27, %p28
    %p30 = scmp.ne.s32.totalorder %s22, %s25
    %p31 = scmp.eq.s32.totalorder %s12, 0
    %p32 = por %p30, %p31
    %p33 = scmp.ne.s32.totalorder %s22, %s25
    %p34 = scmp.eq.s32.totalorder %s17, 1
    %p35 = por %p33, %p34
    %p36 = scmp.ne.s32.totalorder %s25, %s26
    %p37 = scmp.eq.s32.totalorder %s17, 0
    %p38 = por %p36, %p37
    %p39 = scmp.ne.s32.totalorder %s25, %s26
    %p40 = scmp.eq.s32.totalorder %s18, 1
    %p41 = por %p39, %p40
    %p43 = scmp.ne.s32.totalorder %s26, %s42
    %p44 = scmp.eq.s32.totalorder %s18, 0
    %p45 = por %p43, %p44
    %s47 = sadd.s32 %s46, 1
    %p50 = scmp.eq.s32.totalorder %s12, 1
    %p51 = scmp.ne.s32.totalorder %s46, %s48
    %p52 = scmp.eq.s32.totalorder %s12, 0
    %p53 = por %p51, %p52
    %p54 = scmp.ne.s32.totalorder %s46, %s48
    %p55 = scmp.eq.s32.totalorder %s17, 1
    %p56 = por %p54, %p55
    %p57 = scmp.ne.s32.totalorder %s48, %s49
    %p58 = scmp.eq.s32.totalorder %s17, 0
    %p59 = por %p57, %p58
    %p60 = scmp.ne.s32.totalorder %s48, %s49
    %p61 = scmp.eq.s32.totalorder %s18, 1
    %p62 = por %p60, %p61
    %p64 = scmp.ne.s32.totalorder %s49, %s63
    %p65 = scmp.eq.s32.totalorder %s18, 0
    %p66 = por %p64, %p65
    %s68 = sadd.s32 %s67, 1
    %p71 = scmp.eq.s32.totalorder %s12, 1
    %p72 = scmp.ne.s32.totalorder %s67, %s69
    %p73 = scmp.eq.s32.totalorder %s12, 0
    %p74 = por %p72, %p73
    %p75 = scmp.ne.s32.totalorder %s67, %s69
    %p76 = scmp.eq.s32.totalorder %s17, 1
    %p77 = por %p75, %p76
    %p78 = scmp.ne.s32.totalorder %s69, %s70
    %p79 = scmp.eq.s32.totalorder %s17, 0
    %p80 = por %p78, %p79
    %p81 = scmp.ne.s32.totalorder %s69, %s70
    %p82 = scmp.eq.s32.totalorder %s18, 1
    %p83 = por %p81, %p82
    %p85 = scmp.ne.s32.totalorder %s70, %s84
    %p86 = scmp.eq.s32.totalorder %s18, 0
    %p87 = por %p85, %p86
    %s89 = sadd.s32 %s88, 1
    %p92 = scmp.eq.s32.totalorder %s12, 1
    %p93 = scmp.ne.s32.totalorder %s88, %s90
    %p94 = scmp.eq.s32.totalorder %s12, 0
    %p95 = por %p93, %p94
    %p96 = scmp.ne.s32.totalorder %s88, %s90
    %p97 = scmp.eq.s32.totalorder %s17, 1
    %p98 = por %p96, %p97
    %p99 = scmp.ne.s32.totalorder %s90, %s91
    %p100 = scmp.eq.s32.totalorder %s17, 0
    %p101 = por %p99, %p100
    %p102 = scmp.ne.s32.totalorder %s90, %s91
    %p103 = scmp.eq.s32.totalorder %s18, 1
    %p104 = por %p102, %p103
    %p106 = scmp.ne.s32.totalorder %s91, %s105
    %p107 = scmp.eq.s32.totalorder %s18, 0
    %p108 = por %p106, %p107
    %s110 = sadd.s32 %s109, 1
    %p113 = scmp.eq.s32.totalorder %s12, 1
    %p114 = scmp.ne.s32.totalorder %s109, %s111
    %p115 = scmp.eq.s32.totalorder %s12, 0
    %p116 = por %p114, %p115
    %p117 = scmp.ne.s32.totalorder %s109, %s111
    %p118 = scmp.eq.s32.totalorder %s17, 1
    %p119 = por %p117, %p118
    %p120 = scmp.ne.s32.totalorder %s111, %s112
    %p121 = scmp.eq.s32.totalorder %s17, 0
    %p122 = por %p120, %p121
    %p123 = scmp.ne.s32.totalorder %s111, %s112
    %p124 = scmp.eq.s32.totalorder %s18, 1
    %p125 = por %p123, %p124
    %p127 = scmp.ne.s32.totalorder %s112, %s126
    %p128 = scmp.eq.s32.totalorder %s18, 0
    %p129 = por %p127, %p128
    %s131 = sadd.s32 %s130, 1
    %p134 = scmp.eq.s32.totalorder %s12, 1
    %p135 = scmp.ne.s32.totalorder %s130, %s132
    %p136 = scmp.eq.s32.totalorder %s12, 0
    %p137 = por %p135, %p136
    %p138 = scmp.ne.s32.totalorder %s130, %s132
    %p139 = scmp.eq.s32.totalorder %s17, 1
    %p140 = por %p138, %p139
    %p141 = scmp.ne.s32.totalorder %s132, %s133
    %p142 = scmp.eq.s32.totalorder %s17, 0
    %p143 = por %p141, %p142
    %p144 = scmp.ne.s32.totalorder %s132, %s133
    %p145 = scmp.eq.s32.totalorder %s18, 1
    %p146 = por %p144, %p145
    %p148 = scmp.ne.s32.totalorder %s133, %s147
    %p149 = scmp.eq.s32.totalorder %s18, 0
    %p150 = por %p148, %p149
    %s151 = ssub.s32 %s12, %s19
    %p152 = scmp.eq.s32.totalorder %s151, 0
    %s154 = sadd.s32 %s153, 1
    %s155 = scalar_select %p152, %s153, %s154
    %p158 = pneg %p152
    %p159 = scmp.eq.s32.totalorder %s12, 1
    %p160 = por %p158, %p159
    %p161 = scmp.ne.s32.totalorder %s153, %s156
    %p162 = scmp.eq.s32.totalorder %s12, 0
    %p163 = por %p161, %p162
    %p164 = scmp.ne.s32.totalorder %s153, %s156
    %p165 = scmp.eq.s32.totalorder %s17, 1
    %p166 = por %p164, %p165
    %p167 = scmp.ne.s32.totalorder %s156, %s157
    %p168 = scmp.eq.s32.totalorder %s17, 0
    %p169 = por %p167, %p168
    %p170 = scmp.ne.s32.totalorder %s156, %s157
    %p171 = scmp.eq.s32.totalorder %s18, 1
    %p172 = por %p170, %p171
    %p174 = scmp.ne.s32.totalorder %s157, %s173
    %p175 = scmp.eq.s32.totalorder %s18, 0
    %p176 = por %p174, %p175
    %p177 = scmp.le.s32.totalorder 1, %s12
    %p178 = scmp.lt.s32.totalorder %s12, 3
    %p179 = pnand %p177, %p178
    %p180 = pneg %p179
    // Predicated region
    $region9: #{tpu_custom_call.1} parent=5 // pred_check
      _
    $region10: #{tpu_custom_call.1} parent=5 // pred_check_branch
      %182 = sbr.rel (%p179) target = $region12
    $region11: #{tpu_custom_call.1} parent=5 // pred_region
      %s183 = ssub.s32 %s12, 1
      // Predicated region
      $region13: #{tpu_custom_call.1} parent=11 // pred_check
        %p184 = pneg %p59
      $region14: #{tpu_custom_call.1} parent=11 // pred_check_branch
        %186 = sbr.rel (%p184) target = $region16
      $region15: #{tpu_custom_call.1} parent=11 // pred_region
        _
      $region16: #{tpu_custom_call.1} parent=11 // pred_fallthru
        _
      // Predicated region
      $region17: #{tpu_custom_call.1} parent=11 // pred_check
        %p187 = pneg %p80
      $region18: #{tpu_custom_call.1} parent=11 // pred_check_branch
        %189 = sbr.rel (%p187) target = $region20
      $region19: #{tpu_custom_call.1} parent=11 // pred_region
        _
      $region20: #{tpu_custom_call.1} parent=11 // pred_fallthru
        _
      // Predicated region
      $region21: #{tpu_custom_call.1} parent=11 // pred_check
        %p190 = pneg %p101
      $region22: #{tpu_custom_call.1} parent=11 // pred_check_branch
        %192 = sbr.rel (%p190) target = $region24
      $region23: #{tpu_custom_call.1} parent=11 // pred_region
        _
      $region24: #{tpu_custom_call.1} parent=11 // pred_fallthru
        _
      // Predicated region
      $region25: #{tpu_custom_call.1} parent=11 // pred_check
        %p193 = pneg %p122
      $region26: #{tpu_custom_call.1} parent=11 // pred_check_branch
        %195 = sbr.rel (%p193) target = $region28
      $region27: #{tpu_custom_call.1} parent=11 // pred_region
        _
      $region28: #{tpu_custom_call.1} parent=11 // pred_fallthru
        _
      // Predicated region
      $region29: #{tpu_custom_call.1} parent=11 // pred_check
        %p196 = pneg %p143
      $region30: #{tpu_custom_call.1} parent=11 // pred_check_branch
        %198 = sbr.rel (%p196) target = $region32
      $region31: #{tpu_custom_call.1} parent=11 // pred_region
        _
      $region32: #{tpu_custom_call.1} parent=11 // pred_fallthru
        _
    $region12: #{tpu_custom_call.1} parent=5 // pred_fallthru
      _
    %p199 = scmp.lt.s32.totalorder %s12, 2
    // Predicated region
    $region33: #{tpu_custom_call.1} parent=5 // pred_check
      %p200 = pneg %p199
    $region34: #{tpu_custom_call.1} parent=5 // pred_check_branch
      %202 = sbr.rel (%p200) target = $region36
    $region35: #{tpu_custom_call.1} parent=5 // pred_region
      // Predicated region
      $region37: #{tpu_custom_call.1} parent=35 // pred_check
        %p203 = pneg %p32
      $region38: #{tpu_custom_call.1} parent=35 // pred_check_branch
        %205 = sbr.rel (%p203) target = $region40
      $region39: #{tpu_custom_call.1} parent=35 // pred_region
        %s206 = smul.u32 8, %s12
        %p207 = scmp.lt.s32.totalorder %s206, 15
        %s208 = scalar_select %p207, %s206, 15
        %s209 = smul.addr %s208, 8
        %s210 = scalar_lea.vmem %s0, %s209
        %s211 = smul.u32 8, %s12
      $region40: #{tpu_custom_call.1} parent=35 // pred_fallthru
        _
    $region36: #{tpu_custom_call.1} parent=5 // pred_fallthru
      _
    %p212 = scmp.le.s32.totalorder 1, %s12
    %p213 = scmp.lt.s32.totalorder %s12, 3
    %p214 = pnand %p212, %p213
    %p215 = pneg %p214
    // Predicated region
    $region41: #{tpu_custom_call.1} parent=5 // pred_check
      _
    $region42: #{tpu_custom_call.1} parent=5 // pred_check_branch
      %217 = sbr.rel (%p214) target = $region44
    $region43: #{tpu_custom_call.1} parent=5 // pred_region
      %s218 = ssub.s32 %s12, 1
      %s219 = smul.u32 8, %s17
      %p220 = scmp.lt.s32.totalorder %s219, 15
      %s221 = scalar_select %p220, %s219, 15
      %s222 = smul.addr %s221, 8
      %s223 = scalar_lea.vmem %s0, %s222
      %p224 = pneg %p38
      %p225 = pneg %p35
      %p226 = pneg %p59
      %p227 = pneg %p56
      %p228 = pneg %p80
      %p229 = pneg %p77
      %p230 = pneg %p101
      %p231 = pneg %p98
      %p232 = pneg %p122
      %p233 = pneg %p119
      %p234 = pneg %p143
      %p235 = pneg %p140
      %p236 = pneg %p169
      %p237 = pneg %p166
      %s238 = smul.u32 8, %s17
      %p239 = scmp.lt.s32.totalorder %s238, 15
      %s240 = scalar_select %p239, %s238, 15
      %s241 = smul.addr %s240, 8
      %s242 = scalar_lea.vmem %s6, %s241
      %s243 = smul.u32 8, %s17
      %p244 = scmp.lt.s32.totalorder %s243, 15
      %s245 = scalar_select %p244, %s243, 15
      %s246 = smul.addr %s245, 8
      %s247 = scalar_lea.vmem %s0, %s246
      %s248 = smul.u32 8, %s17
      %s249 = smul.u32 8, %s17
      %p250 = scmp.lt.s32.totalorder %s249, 15
      %s251 = scalar_select %p250, %s249, 15
      %s252 = smul.addr %s251, 8
      %s253 = scalar_lea.vmem %s6, %s252
      %s254 = smul.u32 8, %s17
      %v256 = vld [vmem:[%s247] sm:$0xff]
      %v257 = vld [vmem:[%s247 + $0x8] sm:$0xff]
      %v258 = vld [vmem:[%s247 + $0x10] sm:$0xff]
      %v259 = vld [vmem:[%s247 + $0x18] sm:$0xff]
      %v260 = vld [vmem:[%s247 + $0x20] sm:$0xff]
      %v261 = vld [vmem:[%s247 + $0x28] sm:$0xff]
      %v262 = vld [vmem:[%s247 + $0x30] sm:$0xff]
      %v263 = vld [vmem:[%s247 + $0x38] sm:$0xff]
      %v264 = vpack.c.bf16 %v257, %v256
      %v265 = vpack.c.bf16 %v259, %v258
      %v266 = vpack.c.bf16 %v261, %v260
      %v267 = vpack.c.bf16 %v263, %v262
      %v268 = vld [vmem:[%s1] sm:$0xf]
      %v269 = vld [vmem:[%s1 + $0x4] sm:$0xf]
      %v270 = vld [vmem:[%s1 + $0x8] sm:$0xf]
      %v271 = vld [vmem:[%s1 + $0xc] sm:$0xf]
      %v276 = vunpack.c.l.b16 %v268
      %v277 = vunpack.c.l.b16 %v269
      %v278 = vunpack.c.l.b16 %v270
      %v279 = vunpack.c.l.b16 %v271
      %v280 = vpack.c.b16 %v277, %v276
      %v281 = vpack.c.b16 %v279, %v278
      %vm284 = vcmask 261120
      %v286 = vsel %vm284, %v264, 0
      %v289 = vsel %vm284, %v265, 0
      %v292 = vsel %vm284, %v266, 0
      %v295 = vsel %vm284, %v267, 0
      %297 = vmatpush.bf16.msra.mxu0 0
      %298 = vmatpush.bf16.msra.mxu0 0
      %299 = vmatpush.bf16.msra.mxu0 0
      %300 = vmatpush.bf16.msra.mxu0 0
      %301 = vmatpush.bf16.msra.mxu0 0
      %302 = vmatpush.bf16.msra.mxu0 0
      %303 = vmatpush.bf16.msra.mxu0 %v281
      %304 = vmatpush.bf16.msra.mxu0 %v280
      %305 = vmatmul.bf16.gmra.mxu0 %v286
      %v306 = vpop.f32.mrf.mxu0
      %v307 = vadd.f32 0.0, %v306
      %v308 = vpop.f32.mrf.mxu0
      %v309 = vadd.f32 0.0, %v308
      %310 = vmatmul.bf16.gmra.mxu0 %v289
      %v311 = vpop.f32.mrf.mxu0
      %v312 = vadd.f32 0.0, %v311
      %v313 = vpop.f32.mrf.mxu0
      %v314 = vadd.f32 0.0, %v313
      %315 = vmatmul.bf16.gmra.mxu0 %v292
      %v316 = vpop.f32.mrf.mxu0
      %v317 = vadd.f32 0.0, %v316
      %v318 = vpop.f32.mrf.mxu0
      %v319 = vadd.f32 0.0, %v318
      %320 = vmatmul.bf16.gmra.mxu0 %v295
      %v321 = vpop.f32.mrf.mxu0
      %v322 = vadd.f32 0.0, %v321
      %v323 = vpop.f32.mrf.mxu0
      %v324 = vadd.f32 0.0, %v323
      %325 = vdwg.mxu0
      %v326 = vmul.f32 %v307, %v307
      %v327 = vmul.f32 %v309, %v309
      %v328 = vmul.f32 %v312, %v312
      %v329 = vmul.f32 %v314, %v314
      %v330 = vmul.f32 %v317, %v317
      %v331 = vmul.f32 %v319, %v319
      %v332 = vmul.f32 %v322, %v322
      %v333 = vmul.f32 %v324, %v324
      %v334 = vsel %vm284, %v326, 0.0
      %v335 = vsel %vm284, %v327, 0.0
      %v336 = vadd.f32 %v334, %v335
      %v337 = vrot.slane %v336, 4
      %v338 = vadd.f32 %v336, %v337
      %v339 = vrot.slane %v338, 2
      %v340 = vadd.f32 %v338, %v339
      %v341 = vrot.slane %v340, 1
      %v342 = vadd.f32 %v340, %v341
      %v343 = vsel %vm284, %v328, 0.0
      %v344 = vsel %vm284, %v329, 0.0
      %v345 = vadd.f32 %v343, %v344
      %v346 = vrot.slane %v345, 4
      %v347 = vadd.f32 %v345, %v346
      %v348 = vrot.slane %v347, 2
      %v349 = vadd.f32 %v347, %v348
      %v350 = vrot.slane %v349, 1
      %v351 = vadd.f32 %v349, %v350
      %v352 = vsel %vm284, %v330, 0.0
      %v353 = vsel %vm284, %v331, 0.0
      %v354 = vadd.f32 %v352, %v353
      %v355 = vrot.slane %v354, 4
      %v356 = vadd.f32 %v354, %v355
      %v357 = vrot.slane %v356, 2
      %v358 = vadd.f32 %v356, %v357
      %v359 = vrot.slane %v358, 1
      %v360 = vadd.f32 %v358, %v359
      %v361 = vsel %vm284, %v332, 0.0
      %v362 = vsel %vm284, %v333, 0.0
      %v363 = vadd.f32 %v361, %v362
      %v364 = vrot.slane %v363, 4
      %v365 = vadd.f32 %v363, %v364
      %v366 = vrot.slane %v365, 2
      %v367 = vadd.f32 %v365, %v366
      %v368 = vrot.slane %v367, 1
      %v369 = vadd.f32 %v367, %v368
      %vm370 = vcmask 523520
      %v371 = vsel %vm370, %v326, 0.0
      %v372 = vsel %vm370, %v327, 0.0
      %v373 = vadd.f32 %v371, %v372
      %v374 = vrot.slane %v373, 4
      %v375 = vadd.f32 %v373, %v374
      %v376 = vrot.slane %v375, 2
      %v377 = vadd.f32 %v375, %v376
      %v378 = vrot.slane %v377, 1
      %v379 = vadd.f32 %v377, %v378
      %v380 = vsel %vm370, %v328, 0.0
      %v381 = vsel %vm370, %v329, 0.0
      %v382 = vadd.f32 %v380, %v381
      %v383 = vrot.slane %v382, 4
      %v384 = vadd.f32 %v382, %v383
      %v385 = vrot.slane %v384, 2
      %v386 = vadd.f32 %v384, %v385
      %v387 = vrot.slane %v386, 1
      %v388 = vadd.f32 %v386, %v387
      %v389 = vsel %vm370, %v330, 0.0
      %v390 = vsel %vm370, %v331, 0.0
      %v391 = vadd.f32 %v389, %v390
      %v392 = vrot.slane %v391, 4
      %v393 = vadd.f32 %v391, %v392
      %v394 = vrot.slane %v393, 2
      %v395 = vadd.f32 %v393, %v394
      %v396 = vrot.slane %v395, 1
      %v397 = vadd.f32 %v395, %v396
      %v398 = vsel %vm370, %v332, 0.0
      %v399 = vsel %vm370, %v333, 0.0
      %v400 = vadd.f32 %v398, %v399
      %v401 = vrot.slane %v400, 4
      %v402 = vadd.f32 %v400, %v401
      %v403 = vrot.slane %v402, 2
      %v404 = vadd.f32 %v402, %v403
      %v405 = vrot.slane %v404, 1
      %v406 = vadd.f32 %v404, %v405
      %v407 = vmax.f32 %v342, 1e-24
      %v408 = vmax.f32 %v351, 1e-24
      %v409 = vmax.f32 %v360, 1e-24
      %v410 = vmax.f32 %v369, 1e-24
      %v411 = vrsqrt.pop %v407
      %v412 = vmul.f32 %v411, %v407
      %v413 = vmul.f32 %v412, %v411
      %v414 = vmul.f32 0.5, %v413
      %v415 = vsub.f32 1.5, %v414
      %v416 = vmul.f32 %v411, %v415
      %vm417 = vweird.f32 %v407
      %vm418 = vweird.f32 %v411
      %vm419 = vmor %vm417, %vm418
      %v420 = vsel %vm419, %v411, %v416
      %v421 = vrsqrt.pop %v408
      %v422 = vmul.f32 %v421, %v408
      %v423 = vmul.f32 %v422, %v421
      %v424 = vmul.f32 0.5, %v423
      %v425 = vsub.f32 1.5, %v424
      %v426 = vmul.f32 %v421, %v425
      %vm427 = vweird.f32 %v408
      %vm428 = vweird.f32 %v421
      %vm429 = vmor %vm427, %vm428
      %v430 = vsel %vm429, %v421, %v426
      %v431 = vrsqrt.pop %v409
      %v432 = vmul.f32 %v431, %v409
      %v433 = vmul.f32 %v432, %v431
      %v434 = vmul.f32 0.5, %v433
      %v435 = vsub.f32 1.5, %v434
      %v436 = vmul.f32 %v431, %v435
      %vm437 = vweird.f32 %v409
      %vm438 = vweird.f32 %v431
      %vm439 = vmor %vm437, %vm438
      %v440 = vsel %vm439, %v431, %v436
      %v441 = vrsqrt.pop %v410
      %v442 = vmul.f32 %v441, %v410
      %v443 = vmul.f32 %v442, %v441
      %v444 = vmul.f32 0.5, %v443
      %v445 = vsub.f32 1.5, %v444
      %v446 = vmul.f32 %v441, %v445
      %vm447 = vweird.f32 %v410
      %vm448 = vweird.f32 %v441
      %vm449 = vmor %vm447, %vm448
      %v450 = vsel %vm449, %v441, %v446
      %v451 = vmax.f32 %v379, 1e-24
      %v452 = vmax.f32 %v388, 1e-24
      %v453 = vmax.f32 %v397, 1e-24
      %v454 = vmax.f32 %v406, 1e-24
      %v455 = vrsqrt.pop %v451
      %v456 = vmul.f32 %v455, %v451
      %v457 = vmul.f32 %v456, %v455
      %v458 = vmul.f32 0.5, %v457
      %v459 = vsub.f32 1.5, %v458
      %v460 = vmul.f32 %v455, %v459
      %vm461 = vweird.f32 %v451
      %vm462 = vweird.f32 %v455
      %vm463 = vmor %vm461, %vm462
      %v464 = vsel %vm463, %v455, %v460
      %v465 = vrsqrt.pop %v452
      %v466 = vmul.f32 %v465, %v452
      %v467 = vmul.f32 %v466, %v465
      %v468 = vmul.f32 0.5, %v467
      %v469 = vsub.f32 1.5, %v468
      %v470 = vmul.f32 %v465, %v469
      %vm471 = vweird.f32 %v452
      %vm472 = vweird.f32 %v465
      %vm473 = vmor %vm471, %vm472
      %v474 = vsel %vm473, %v465, %v470
      %v475 = vrsqrt.pop %v453
      %v476 = vmul.f32 %v475, %v453
      %v477 = vmul.f32 %v476, %v475
      %v478 = vmul.f32 0.5, %v477
      %v479 = vsub.f32 1.5, %v478
      %v480 = vmul.f32 %v475, %v479
      %vm481 = vweird.f32 %v453
      %vm482 = vweird.f32 %v475
      %vm483 = vmor %vm481, %vm482
      %v484 = vsel %vm483, %v475, %v480
      %v485 = vrsqrt.pop %v454
      %v486 = vmul.f32 %v485, %v454
      %v487 = vmul.f32 %v486, %v485
      %v488 = vmul.f32 0.5, %v487
      %v489 = vsub.f32 1.5, %v488
      %v490 = vmul.f32 %v485, %v489
      %vm491 = vweird.f32 %v454
      %vm492 = vweird.f32 %v485
      %vm493 = vmor %vm491, %vm492
      %v494 = vsel %vm493, %v485, %v490
      %v495 = vld [vmem:[%s2] sm:$0x1]
      %v496 = vmul.f32 %v420, %v495
      %v497 = vmul.f32 %v430, %v495
      %v498 = vmul.f32 %v440, %v495
      %v499 = vmul.f32 %v450, %v495
      %v500 = vperm.slane %v496, 0
      %v501 = vperm.slane %v497, 0
      %v502 = vperm.slane %v498, 0
      %v503 = vperm.slane %v499, 0
      %v504 = vmul.f32 %v307, %v500
      %v505 = vmul.f32 %v309, %v500
      %v506 = vmul.f32 %v312, %v501
      %v507 = vmul.f32 %v314, %v501
      %v508 = vmul.f32 %v317, %v502
      %v509 = vmul.f32 %v319, %v502
      %v510 = vmul.f32 %v322, %v503
      %v511 = vmul.f32 %v324, %v503
      %v512 = vpack.c.bf16 %v504, %v504
      %v513 = vpack.c.bf16 %v505, %v505
      %v514 = vpack.c.bf16 %v506, %v506
      %v515 = vpack.c.bf16 %v507, %v507
      %v516 = vpack.c.bf16 %v508, %v508
      %v517 = vpack.c.bf16 %v509, %v509
      %v518 = vpack.c.bf16 %v510, %v510
      %v519 = vpack.c.bf16 %v511, %v511
      %v520 = vmul.f32 %v307, %v464
      %v521 = vmul.f32 %v309, %v464
      %v522 = vmul.f32 %v312, %v474
      %v523 = vmul.f32 %v314, %v474
      %v524 = vmul.f32 %v317, %v484
      %v525 = vmul.f32 %v319, %v484
      %v526 = vmul.f32 %v322, %v494
      %v527 = vmul.f32 %v324, %v494
      %v528 = vpack.c.bf16 %v520, %v520
      %v529 = vpack.c.bf16 %v521, %v521
      %v530 = vpack.c.bf16 %v522, %v522
      %v531 = vpack.c.bf16 %v523, %v523
      %v532 = vpack.c.bf16 %v524, %v524
      %v533 = vpack.c.bf16 %v525, %v525
      %v534 = vpack.c.bf16 %v526, %v526
      %v535 = vpack.c.bf16 %v527, %v527
      %v536 = vld [vmem:[%s3] sm:$0xff]
      %v537 = vld [vmem:[%s3 + $0x8] sm:$0xff]
      %v538 = vld [vmem:[%s3 + $0x10] sm:$0xff]
      %v539 = vld [vmem:[%s3 + $0x18] sm:$0xff]
      %v542 = vunpack.c.l.b16 %v512
      %v543 = vunpack.c.l.b16 %v513
      %v544 = vpack.c.b16 %v543, %v542
      %546 = vxpose.xlu0.c.b16.start [1/8] %v544, 128
      %547 = vxpose.xlu0.c.b16.cont [2/8] 0, 128
      %548 = vxpose.xlu0.c.b16.cont [3/8] 0, 128
      %549 = vxpose.xlu0.c.b16.cont [4/8] 0, 128
      %550 = vxpose.xlu0.c.b16.cont [5/8] 0, 128
      %551 = vxpose.xlu0.c.b16.cont [6/8] 0, 128
      %552 = vxpose.xlu0.c.b16.cont [7/8] 0, 128
      %553 = vxpose.xlu0.c.b16.end [8/8] 0, 128
      %v554 = vpop.trf.xlu0
      %v555 = vpop.trf.xlu0
      %v556 = vpop.trf.xlu0
      %v557 = vpop.trf.xlu0
      %v558 = vpop.trf.xlu0
      %v559 = vpop.trf.xlu0
      %v560 = vpop.trf.xlu0
      %v561 = vpop.trf.xlu0
      %v564 = vunpack.c.l.b16 %v528
      %v565 = vunpack.c.l.b16 %v529
      %v566 = vpack.c.b16 %v565, %v564
      %567 = vrot.lane.b32.xlu0 %v566, 96
      %v568 = vpop.permute.xlu0 %567
      %vm570 = vcmask 130048
      %v572 = vsel %vm570, %v554, 0
      %v575 = vsel %vm570, %v555, 0
      %577 = vmatpush.bf16.msra.mxu0 0
      %578 = vmatpush.bf16.msra.mxu0 0
      %579 = vmatpush.bf16.msra.mxu0 0
      %580 = vmatpush.bf16.msra.mxu0 0
      %581 = vmatpush.bf16.msra.mxu0 0
      %582 = vmatpush.bf16.msra.mxu0 0
      %583 = vmatpush.bf16.msra.mxu0 0
      %584 = vmatpush.bf16.msra.mxu0 %v568
      %585 = vmatmul.bf16.gmra.mxu0 %v572
      %v586 = vpop.f32.mrf.mxu0
      %v587 = vadd.f32 %v536, %v586
      %v588 = vpop.f32.mrf.mxu0
      %v589 = vadd.f32 %v537, %v588
      %590 = vmatmul.bf16.gmra.mxu0 %v575
      %v591 = vpop.f32.mrf.mxu0
      %v592 = vadd.f32 %v538, %v591
      %v593 = vpop.f32.mrf.mxu0
      %v594 = vadd.f32 %v539, %v593
      %595 = vdwg.mxu0
      %v598 = vunpack.c.l.b16 %v514
      %v599 = vunpack.c.l.b16 %v515
      %v600 = vpack.c.b16 %v599, %v598
      %602 = vxpose.xlu0.c.b16.start [1/8] %v600, 128
      %603 = vxpose.xlu0.c.b16.cont [2/8] 0, 128
      %604 = vxpose.xlu0.c.b16.cont [3/8] 0, 128
      %605 = vxpose.xlu0.c.b16.cont [4/8] 0, 128
      %606 = vxpose.xlu0.c.b16.cont [5/8] 0, 128
      %607 = vxpose.xlu0.c.b16.cont [6/8] 0, 128
      %608 = vxpose.xlu0.c.b16.cont [7/8] 0, 128
      %609 = vxpose.xlu0.c.b16.end [8/8] 0, 128
      %v610 = vpop.trf.xlu0
      %v611 = vpop.trf.xlu0
      %v612 = vpop.trf.xlu0
      %v613 = vpop.trf.xlu0
      %v614 = vpop.trf.xlu0
      %v615 = vpop.trf.xlu0
      %v616 = vpop.trf.xlu0
      %v617 = vpop.trf.xlu0
      %v620 = vunpack.c.l.b16 %v530
      %v621 = vunpack.c.l.b16 %v531
      %v622 = vpack.c.b16 %v621, %v620
      %623 = vrot.lane.b32.xlu0 %v622, 96
      %v624 = vpop.permute.xlu0 %623
      %v627 = vsel %vm570, %v610, 0
      %v630 = vsel %vm570, %v611, 0
      %632 = vmatpush.bf16.msra.mxu0 0
      %633 = vmatpush.bf16.msra.mxu0 0
      %634 = vmatpush.bf16.msra.mxu0 0
      %635 = vmatpush.bf16.msra.mxu0 0
      %636 = vmatpush.bf16.msra.mxu0 0
      %637 = vmatpush.bf16.msra.mxu0 0
      %638 = vmatpush.bf16.msra.mxu0 0
      %639 = vmatpush.bf16.msra.mxu0 %v624
      %640 = vmatmul.bf16.gmra.mxu0 %v627
      %v641 = vpop.f32.mrf.mxu0
      %v642 = vadd.f32 %v536, %v641
      %v643 = vpop.f32.mrf.mxu0
      %v644 = vadd.f32 %v537, %v643
      %645 = vmatmul.bf16.gmra.mxu0 %v630
      %v646 = vpop.f32.mrf.mxu0
      %v647 = vadd.f32 %v538, %v646
      %v648 = vpop.f32.mrf.mxu0
      %v649 = vadd.f32 %v539, %v648
      %650 = vdwg.mxu0
      %v653 = vunpack.c.l.b16 %v516
      %v654 = vunpack.c.l.b16 %v517
      %v655 = vpack.c.b16 %v654, %v653
      %657 = vxpose.xlu0.c.b16.start [1/8] %v655, 128
      %658 = vxpose.xlu0.c.b16.cont [2/8] 0, 128
      %659 = vxpose.xlu0.c.b16.cont [3/8] 0, 128
      %660 = vxpose.xlu0.c.b16.cont [4/8] 0, 128
      %661 = vxpose.xlu0.c.b16.cont [5/8] 0, 128
      %662 = vxpose.xlu0.c.b16.cont [6/8] 0, 128
      %663 = vxpose.xlu0.c.b16.cont [7/8] 0, 128
      %664 = vxpose.xlu0.c.b16.end [8/8] 0, 128
      %v665 = vpop.trf.xlu0
      %v666 = vpop.trf.xlu0
      %v667 = vpop.trf.xlu0
      %v668 = vpop.trf.xlu0
      %v669 = vpop.trf.xlu0
      %v670 = vpop.trf.xlu0
      %v671 = vpop.trf.xlu0
      %v672 = vpop.trf.xlu0
      %v675 = vunpack.c.l.b16 %v532
      %v676 = vunpack.c.l.b16 %v533
      %v677 = vpack.c.b16 %v676, %v675
      %678 = vrot.lane.b32.xlu0 %v677, 96
      %v679 = vpop.permute.xlu0 %678
      %v682 = vsel %vm570, %v665, 0
      %v685 = vsel %vm570, %v666, 0
      %687 = vmatpush.bf16.msra.mxu0 0
      %688 = vmatpush.bf16.msra.mxu0 0
      %689 = vmatpush.bf16.msra.mxu0 0
      %690 = vmatpush.bf16.msra.mxu0 0
      %691 = vmatpush.bf16.msra.mxu0 0
      %692 = vmatpush.bf16.msra.mxu0 0
      %693 = vmatpush.bf16.msra.mxu0 0
      %694 = vmatpush.bf16.msra.mxu0 %v679
      %695 = vmatmul.bf16.gmra.mxu0 %v682
      %v696 = vpop.f32.mrf.mxu0
      %v697 = vadd.f32 %v536, %v696
      %v698 = vpop.f32.mrf.mxu0
      %v699 = vadd.f32 %v537, %v698
      %700 = vmatmul.bf16.gmra.mxu0 %v685
      %v701 = vpop.f32.mrf.mxu0
      %v702 = vadd.f32 %v538, %v701
      %v703 = vpop.f32.mrf.mxu0
      %v704 = vadd.f32 %v539, %v703
      %705 = vdwg.mxu0
      %v708 = vunpack.c.l.b16 %v518
      %v709 = vunpack.c.l.b16 %v519
      %v710 = vpack.c.b16 %v709, %v708
      %712 = vxpose.xlu0.c.b16.start [1/8] %v710, 128
      %713 = vxpose.xlu0.c.b16.cont [2/8] 0, 128
      %714 = vxpose.xlu0.c.b16.cont [3/8] 0, 128
      %715 = vxpose.xlu0.c.b16.cont [4/8] 0, 128
      %716 = vxpose.xlu0.c.b16.cont [5/8] 0, 128
      %717 = vxpose.xlu0.c.b16.cont [6/8] 0, 128
      %718 = vxpose.xlu0.c.b16.cont [7/8] 0, 128
      %719 = vxpose.xlu0.c.b16.end [8/8] 0, 128
      %v720 = vpop.trf.xlu0
      %v721 = vpop.trf.xlu0
      %v722 = vpop.trf.xlu0
      %v723 = vpop.trf.xlu0
      %v724 = vpop.trf.xlu0
      %v725 = vpop.trf.xlu0
      %v726 = vpop.trf.xlu0
      %v727 = vpop.trf.xlu0
      %v730 = vunpack.c.l.b16 %v534
      %v731 = vunpack.c.l.b16 %v535
      %v732 = vpack.c.b16 %v731, %v730
      %733 = vrot.lane.b32.xlu0 %v732, 96
      %v734 = vpop.permute.xlu0 %733
      %v737 = vsel %vm570, %v720, 0
      %v740 = vsel %vm570, %v721, 0
      %742 = vmatpush.bf16.msra.mxu0 0
      %743 = vmatpush.bf16.msra.mxu0 0
      %744 = vmatpush.bf16.msra.mxu0 0
      %745 = vmatpush.bf16.msra.mxu0 0
      %746 = vmatpush.bf16.msra.mxu0 0
      %747 = vmatpush.bf16.msra.mxu0 0
      %748 = vmatpush.bf16.msra.mxu0 0
      %749 = vmatpush.bf16.msra.mxu0 %v734
      %750 = vmatmul.bf16.gmra.mxu0 %v737
      %v751 = vpop.f32.mrf.mxu0
      %v752 = vadd.f32 %v536, %v751
      %v753 = vpop.f32.mrf.mxu0
      %v754 = vadd.f32 %v537, %v753
      %755 = vmatmul.bf16.gmra.mxu0 %v740
      %v756 = vpop.f32.mrf.mxu0
      %v757 = vadd.f32 %v538, %v756
      %v758 = vpop.f32.mrf.mxu0
      %v759 = vadd.f32 %v539, %v758
      %760 = vdwg.mxu0
      %v761 = vsel %vm284, %v587, -inf
      %762 = vmax.xlane.f32.xlu0 %v761
      %v763 = vpop.xlane.xlu0 %762
      %v764 = vsel %vm284, %v589, -inf
      %765 = vmax.xlane.f32.xlu0 %v764
      %v766 = vpop.xlane.xlu0 %765
      %v767 = vsel %vm284, %v592, -inf
      %768 = vmax.xlane.f32.xlu0 %v767
      %v769 = vpop.xlane.xlu0 %768
      %v770 = vsel %vm284, %v594, -inf
      %771 = vmax.xlane.f32.xlu0 %v770
      %v772 = vpop.xlane.xlu0 %771
      %v773 = vsel %vm284, %v642, -inf
      %774 = vmax.xlane.f32.xlu0 %v773
      %v775 = vpop.xlane.xlu0 %774
      %v776 = vsel %vm284, %v644, -inf
      %777 = vmax.xlane.f32.xlu0 %v776
      %v778 = vpop.xlane.xlu0 %777
      %v779 = vsel %vm284, %v647, -inf
      %780 = vmax.xlane.f32.xlu0 %v779
      %v781 = vpop.xlane.xlu0 %780
      %v782 = vsel %vm284, %v649, -inf
      %783 = vmax.xlane.f32.xlu0 %v782
      %v784 = vpop.xlane.xlu0 %783
      %v785 = vsel %vm284, %v697, -inf
      %786 = vmax.xlane.f32.xlu0 %v785
      %v787 = vpop.xlane.xlu0 %786
      %v788 = vsel %vm284, %v699, -inf
      %789 = vmax.xlane.f32.xlu0 %v788
      %v790 = vpop.xlane.xlu0 %789
      %v791 = vsel %vm284, %v702, -inf
      %792 = vmax.xlane.f32.xlu0 %v791
      %v793 = vpop.xlane.xlu0 %792
      %v794 = vsel %vm284, %v704, -inf
      %795 = vmax.xlane.f32.xlu0 %v794
      %v796 = vpop.xlane.xlu0 %795
      %v797 = vsel %vm284, %v752, -inf
      %798 = vmax.xlane.f32.xlu0 %v797
      %v799 = vpop.xlane.xlu0 %798
      %v800 = vsel %vm284, %v754, -inf
      %801 = vmax.xlane.f32.xlu0 %v800
      %v802 = vpop.xlane.xlu0 %801
      %v803 = vsel %vm284, %v757, -inf
      %804 = vmax.xlane.f32.xlu0 %v803
      %v805 = vpop.xlane.xlu0 %804
      %v806 = vsel %vm284, %v759, -inf
      %807 = vmax.xlane.f32.xlu0 %v806
      %v808 = vpop.xlane.xlu0 %807
      %v809 = vsub.f32 %v587, %v763
      %v810 = vsub.f32 %v589, %v766
      %v811 = vsub.f32 %v592, %v769
      %v812 = vsub.f32 %v594, %v772
      %v813 = vsub.f32 %v642, %v775
      %v814 = vsub.f32 %v644, %v778
      %v815 = vsub.f32 %v647, %v781
      %v816 = vsub.f32 %v649, %v784
      %v817 = vsub.f32 %v697, %v787
      %v818 = vsub.f32 %v699, %v790
      %v819 = vsub.f32 %v702, %v793
      %v820 = vsub.f32 %v704, %v796
      %v821 = vsub.f32 %v752, %v799
      %v822 = vsub.f32 %v754, %v802
      %v823 = vsub.f32 %v757, %v805
      %v824 = vsub.f32 %v759, %v808
      %v825 = vmul.f32 %v809, 1.442695
      %v826 = vpow.pop %v825
      %v827 = vmul.f32 %v810, 1.442695
      %v828 = vpow.pop %v827
      %v829 = vmul.f32 %v811, 1.442695
      %v830 = vpow.pop %v829
      %v831 = vmul.f32 %v812, 1.442695
      %v832 = vpow.pop %v831
      %v833 = vmul.f32 %v813, 1.442695
      %v834 = vpow.pop %v833
      %v835 = vmul.f32 %v814, 1.442695
      %v836 = vpow.pop %v835
      %v837 = vmul.f32 %v815, 1.442695
      %v838 = vpow.pop %v837
      %v839 = vmul.f32 %v816, 1.442695
      %v840 = vpow.pop %v839
      %v841 = vmul.f32 %v817, 1.442695
      %v842 = vpow.pop %v841
      %v843 = vmul.f32 %v818, 1.442695
      %v844 = vpow.pop %v843
      %v845 = vmul.f32 %v819, 1.442695
      %v846 = vpow.pop %v845
      %v847 = vmul.f32 %v820, 1.442695
      %v848 = vpow.pop %v847
      %v849 = vmul.f32 %v821, 1.442695
      %v850 = vpow.pop %v849
      %v851 = vmul.f32 %v822, 1.442695
      %v852 = vpow.pop %v851
      %v853 = vmul.f32 %v823, 1.442695
      %v854 = vpow.pop %v853
      %v855 = vmul.f32 %v824, 1.442695
      %v856 = vpow.pop %v855
      %v857 = vsel %vm284, %v826, 0.0
      %858 = vadd.xlane.f32.xlu0 %v857
      %v859 = vpop.xlane.xlu0 %858
      %v860 = vsel %vm284, %v828, 0.0
      %861 = vadd.xlane.f32.xlu0 %v860
      %v862 = vpop.xlane.xlu0 %861
      %v863 = vsel %vm284, %v830, 0.0
      %864 = vadd.xlane.f32.xlu0 %v863
      %v865 = vpop.xlane.xlu0 %864
      %v866 = vsel %vm284, %v832, 0.0
      %867 = vadd.xlane.f32.xlu0 %v866
      %v868 = vpop.xlane.xlu0 %867
      %v869 = vsel %vm284, %v834, 0.0
      %870 = vadd.xlane.f32.xlu0 %v869
      %v871 = vpop.xlane.xlu0 %870
      %v872 = vsel %vm284, %v836, 0.0
      %873 = vadd.xlane.f32.xlu0 %v872
      %v874 = vpop.xlane.xlu0 %873
      %v875 = vsel %vm284, %v838, 0.0
      %876 = vadd.xlane.f32.xlu0 %v875
      %v877 = vpop.xlane.xlu0 %876
      %v878 = vsel %vm284, %v840, 0.0
      %879 = vadd.xlane.f32.xlu0 %v878
      %v880 = vpop.xlane.xlu0 %879
      %v881 = vsel %vm284, %v842, 0.0
      %882 = vadd.xlane.f32.xlu0 %v881
      %v883 = vpop.xlane.xlu0 %882
      %v884 = vsel %vm284, %v844, 0.0
      %885 = vadd.xlane.f32.xlu0 %v884
      %v886 = vpop.xlane.xlu0 %885
      %v887 = vsel %vm284, %v846, 0.0
      %888 = vadd.xlane.f32.xlu0 %v887
      %v889 = vpop.xlane.xlu0 %888
      %v890 = vsel %vm284, %v848, 0.0
      %891 = vadd.xlane.f32.xlu0 %v890
      %v892 = vpop.xlane.xlu0 %891
      %v893 = vsel %vm284, %v850, 0.0
      %894 = vadd.xlane.f32.xlu0 %v893
      %v895 = vpop.xlane.xlu0 %894
      %v896 = vsel %vm284, %v852, 0.0
      %897 = vadd.xlane.f32.xlu0 %v896
      %v898 = vpop.xlane.xlu0 %897
      %v899 = vsel %vm284, %v854, 0.0
      %900 = vadd.xlane.f32.xlu0 %v899
      %v901 = vpop.xlane.xlu0 %900
      %v902 = vsel %vm284, %v856, 0.0
      %903 = vadd.xlane.f32.xlu0 %v902
      %v904 = vpop.xlane.xlu0 %903
      %v905 = vrcp.pop %v859
      %v906 = vrcp.pop %v862
      %v907 = vrcp.pop %v865
      %v908 = vrcp.pop %v868
      %v909 = vrcp.pop %v871
      %v910 = vrcp.pop %v874
      %v911 = vrcp.pop %v877
      %v912 = vrcp.pop %v880
      %v913 = vrcp.pop %v883
      %v914 = vrcp.pop %v886
      %v915 = vrcp.pop %v889
      %v916 = vrcp.pop %v892
      %v917 = vrcp.pop %v895
      %v918 = vrcp.pop %v898
      %v919 = vrcp.pop %v901
      %v920 = vrcp.pop %v904
      %v921 = vmul.f32 %v826, %v905
      %v922 = vmul.f32 %v828, %v906
      %v923 = vmul.f32 %v830, %v907
      %v924 = vmul.f32 %v832, %v908
      %v925 = vmul.f32 %v834, %v909
      %v926 = vmul.f32 %v836, %v910
      %v927 = vmul.f32 %v838, %v911
      %v928 = vmul.f32 %v840, %v912
      %v929 = vmul.f32 %v842, %v913
      %v930 = vmul.f32 %v844, %v914
      %v931 = vmul.f32 %v846, %v915
      %v932 = vmul.f32 %v848, %v916
      %v933 = vmul.f32 %v850, %v917
      %v934 = vmul.f32 %v852, %v918
      %v935 = vmul.f32 %v854, %v919
      %v936 = vmul.f32 %v856, %v920
      %v937 = vpack.c.bf16 %v307, %v307
      %v938 = vpack.c.bf16 %v309, %v309
      %v939 = vpack.c.bf16 %v312, %v312
      %v940 = vpack.c.bf16 %v314, %v314
      %v941 = vpack.c.bf16 %v317, %v317
      %v942 = vpack.c.bf16 %v319, %v319
      %v943 = vpack.c.bf16 %v322, %v322
      %v944 = vpack.c.bf16 %v324, %v324
      %v945 = vpack.c.bf16 %v921, %v921
      %v946 = vpack.c.bf16 %v922, %v922
      %v947 = vpack.c.bf16 %v923, %v923
      %v948 = vpack.c.bf16 %v924, %v924
      %v949 = vpack.c.bf16 %v925, %v925
      %v950 = vpack.c.bf16 %v926, %v926
      %v951 = vpack.c.bf16 %v927, %v927
      %v952 = vpack.c.bf16 %v928, %v928
      %v953 = vpack.c.bf16 %v929, %v929
      %v954 = vpack.c.bf16 %v930, %v930
      %v955 = vpack.c.bf16 %v931, %v931
      %v956 = vpack.c.bf16 %v932, %v932
      %v957 = vpack.c.bf16 %v933, %v933
      %v958 = vpack.c.bf16 %v934, %v934
      %v959 = vpack.c.bf16 %v935, %v935
      %v960 = vpack.c.bf16 %v936, %v936
      %v963 = vunpack.c.l.b16 %v937
      %v964 = vunpack.c.l.b16 %v938
      %v965 = vpack.c.b16 %v964, %v963
      %966 = vrot.lane.b32.xlu0 %v965, 64
      %v967 = vpop.permute.xlu0 %966
      %v972 = vunpack.c.l.b16 %v945
      %v973 = vunpack.c.l.b16 %v946
      %v974 = vunpack.c.l.b16 %v947
      %v975 = vunpack.c.l.b16 %v948
      %v976 = vpack.c.b16 %v973, %v972
      %v977 = vpack.c.b16 %v975, %v974
      %v979 = vsel %vm284, %v967, 0
      %v982 = vsel %vm284, %v976, 0
      %v985 = vsel %vm284, %v977, 0
      %987 = vmatpush.bf16.xpose.msra.mxu0 0
      %988 = vmatpush.bf16.xpose.msra.mxu0 0
      %989 = vmatpush.bf16.xpose.msra.mxu0 0
      %990 = vmatpush.bf16.xpose.msra.mxu0 0
      %991 = vmatpush.bf16.xpose.msra.mxu0 0
      %992 = vmatpush.bf16.xpose.msra.mxu0 0
      %993 = vmatpush.bf16.xpose.msra.mxu0 %v985
      %994 = vmatpush.bf16.xpose.msra.mxu0 %v982
      %995 = vmatmul.bf16.gmra.mxu0 %v979
      %v996 = vpop.f32.mrf.mxu0
      %v997 = vadd.f32 0.0, %v996
      %v998 = vpop.f32.mrf.mxu0
      %v999 = vadd.f32 0.0, %v998
      %1000 = vdwg.mxu0
      %v1003 = vunpack.c.l.b16 %v939
      %v1004 = vunpack.c.l.b16 %v940
      %v1005 = vpack.c.b16 %v1004, %v1003
      %1006 = vrot.lane.b32.xlu0 %v1005, 64
      %v1007 = vpop.permute.xlu0 %1006
      %v1012 = vunpack.c.l.b16 %v949
      %v1013 = vunpack.c.l.b16 %v950
      %v1014 = vunpack.c.l.b16 %v951
      %v1015 = vunpack.c.l.b16 %v952
      %v1016 = vpack.c.b16 %v1013, %v1012
      %v1017 = vpack.c.b16 %v1015, %v1014
      %v1019 = vsel %vm284, %v1007, 0
      %v1022 = vsel %vm284, %v1016, 0
      %v1025 = vsel %vm284, %v1017, 0
      %1027 = vmatpush.bf16.xpose.msra.mxu0 0
      %1028 = vmatpush.bf16.xpose.msra.mxu0 0
      %1029 = vmatpush.bf16.xpose.msra.mxu0 0
      %1030 = vmatpush.bf16.xpose.msra.mxu0 0
      %1031 = vmatpush.bf16.xpose.msra.mxu0 0
      %1032 = vmatpush.bf16.xpose.msra.mxu0 0
      %1033 = vmatpush.bf16.xpose.msra.mxu0 %v1025
      %1034 = vmatpush.bf16.xpose.msra.mxu0 %v1022
      %1035 = vmatmul.bf16.gmra.mxu0 %v1019
      %v1036 = vpop.f32.mrf.mxu0
      %v1037 = vadd.f32 0.0, %v1036
      %v1038 = vpop.f32.mrf.mxu0
      %v1039 = vadd.f32 0.0, %v1038
      %1040 = vdwg.mxu0
      %v1043 = vunpack.c.l.b16 %v941
      %v1044 = vunpack.c.l.b16 %v942
      %v1045 = vpack.c.b16 %v1044, %v1043
      %1046 = vrot.lane.b32.xlu0 %v1045, 64
      %v1047 = vpop.permute.xlu0 %1046
      %v1052 = vunpack.c.l.b16 %v953
      %v1053 = vunpack.c.l.b16 %v954
      %v1054 = vunpack.c.l.b16 %v955
      %v1055 = vunpack.c.l.b16 %v956
      %v1056 = vpack.c.b16 %v1053, %v1052
      %v1057 = vpack.c.b16 %v1055, %v1054
      %v1059 = vsel %vm284, %v1047, 0
      %v1062 = vsel %vm284, %v1056, 0
      %v1065 = vsel %vm284, %v1057, 0
      %1067 = vmatpush.bf16.xpose.msra.mxu0 0
      %1068 = vmatpush.bf16.xpose.msra.mxu0 0
      %1069 = vmatpush.bf16.xpose.msra.mxu0 0
      %1070 = vmatpush.bf16.xpose.msra.mxu0 0
      %1071 = vmatpush.bf16.xpose.msra.mxu0 0
      %1072 = vmatpush.bf16.xpose.msra.mxu0 0
      %1073 = vmatpush.bf16.xpose.msra.mxu0 %v1065
      %1074 = vmatpush.bf16.xpose.msra.mxu0 %v1062
      %1075 = vmatmul.bf16.gmra.mxu0 %v1059
      %v1076 = vpop.f32.mrf.mxu0
      %v1077 = vadd.f32 0.0, %v1076
      %v1078 = vpop.f32.mrf.mxu0
      %v1079 = vadd.f32 0.0, %v1078
      %1080 = vdwg.mxu0
      %v1083 = vunpack.c.l.b16 %v943
      %v1084 = vunpack.c.l.b16 %v944
      %v1085 = vpack.c.b16 %v1084, %v1083
      %1086 = vrot.lane.b32.xlu0 %v1085, 64
      %v1087 = vpop.permute.xlu0 %1086
      %v1092 = vunpack.c.l.b16 %v957
      %v1093 = vunpack.c.l.b16 %v958
      %v1094 = vunpack.c.l.b16 %v959
      %v1095 = vunpack.c.l.b16 %v960
      %v1096 = vpack.c.b16 %v1093, %v1092
      %v1097 = vpack.c.b16 %v1095, %v1094
      %v1099 = vsel %vm284, %v1087, 0
      %v1102 = vsel %vm284, %v1096, 0
      %v1105 = vsel %vm284, %v1097, 0
      %1107 = vmatpush.bf16.xpose.msra.mxu0 0
      %1108 = vmatpush.bf16.xpose.msra.mxu0 0
      %1109 = vmatpush.bf16.xpose.msra.mxu0 0
      %1110 = vmatpush.bf16.xpose.msra.mxu0 0
      %1111 = vmatpush.bf16.xpose.msra.mxu0 0
      %1112 = vmatpush.bf16.xpose.msra.mxu0 0
      %1113 = vmatpush.bf16.xpose.msra.mxu0 %v1105
      %1114 = vmatpush.bf16.xpose.msra.mxu0 %v1102
      %1115 = vmatmul.bf16.gmra.mxu0 %v1099
      %v1116 = vpop.f32.mrf.mxu0
      %v1117 = vadd.f32 0.0, %v1116
      %v1118 = vpop.f32.mrf.mxu0
      %v1119 = vadd.f32 0.0, %v1118
      %1120 = vdwg.mxu0
      %v1121 = vpack.c.bf16 %v999, %v997
      %v1122 = vpack.c.bf16 %v1039, %v1037
      %v1123 = vpack.c.bf16 %v1079, %v1077
      %v1124 = vpack.c.bf16 %v1119, %v1117
      %v1125 = vld [vmem:[%s4] sm:$0xf]
      %v1126 = vld [vmem:[%s4 + $0x4] sm:$0xf]
      %v1127 = vld [vmem:[%s4 + $0x8] sm:$0xf]
      %v1128 = vld [vmem:[%s4 + $0xc] sm:$0xf]
      %v1129 = vld [vmem:[%s5] sm:$0x1]
      %v1131 = vperm.slane %v1129, 0
      %v1137 = vunpack.c.l.b16 %v1125
      %v1138 = vunpack.c.l.b16 %v1126
      %v1139 = vunpack.c.l.b16 %v1127
      %v1140 = vunpack.c.l.b16 %v1128
      %v1141 = vpack.c.b16 %v1138, %v1137
      %v1142 = vpack.c.b16 %v1140, %v1139
      %v1146 = vsel %vm284, %v1121, 0
      %v1149 = vsel %vm284, %v1122, 0
      %v1152 = vsel %vm284, %v1123, 0
      %v1155 = vsel %vm284, %v1124, 0
      %1157 = vmatpush.bf16.msra.mxu0 0
      %1158 = vmatpush.bf16.msra.mxu0 0
      %1159 = vmatpush.bf16.msra.mxu0 0
      %1160 = vmatpush.bf16.msra.mxu0 0
      %1161 = vmatpush.bf16.msra.mxu0 0
      %1162 = vmatpush.bf16.msra.mxu0 0
      %1163 = vmatpush.bf16.msra.mxu0 %v1142
      %1164 = vmatpush.bf16.msra.mxu0 %v1141
      %1165 = vmatmul.bf16.gmra.mxu0 %v1146
      %v1166 = vpop.f32.mrf.mxu0
      %v1167 = vadd.f32 %v1131, %v1166
      %v1168 = vpop.f32.mrf.mxu0
      %v1169 = vadd.f32 %v1131, %v1168
      %1170 = vmatmul.bf16.gmra.mxu0 %v1149
      %v1171 = vpop.f32.mrf.mxu0
      %v1172 = vadd.f32 %v1131, %v1171
      %v1173 = vpop.f32.mrf.mxu0
      %v1174 = vadd.f32 %v1131, %v1173
      %1175 = vmatmul.bf16.gmra.mxu0 %v1152
      %v1176 = vpop.f32.mrf.mxu0
      %v1177 = vadd.f32 %v1131, %v1176
      %v1178 = vpop.f32.mrf.mxu0
      %v1179 = vadd.f32 %v1131, %v1178
      %1180 = vmatmul.bf16.gmra.mxu0 %v1155
      %v1181 = vpop.f32.mrf.mxu0
      %v1182 = vadd.f32 %v1131, %v1181
      %v1183 = vpop.f32.mrf.mxu0
      %v1184 = vadd.f32 %v1131, %v1183
      %1185 = vdwg.mxu0
      %1186 = vst.msk [vmem:[%s253] sm:$0xff] %vm284, %v1167
      %1187 = vst.msk [vmem:[%s253 + $0x8] sm:$0xff] %vm284, %v1169
      %1188 = vst.msk [vmem:[%s253 + $0x10] sm:$0xff] %vm284, %v1172
      %1189 = vst.msk [vmem:[%s253 + $0x18] sm:$0xff] %vm284, %v1174
      %1190 = vst.msk [vmem:[%s253 + $0x20] sm:$0xff] %vm284, %v1177
      %1191 = vst.msk [vmem:[%s253 + $0x28] sm:$0xff] %vm284, %v1179
      %1192 = vst.msk [vmem:[%s253 + $0x30] sm:$0xff] %vm284, %v1182
      %1193 = vst.msk [vmem:[%s253 + $0x38] sm:$0xff] %vm284, %v1184
      %s1194 = smul.u32 8, %s17
      %p1195 = scmp.lt.s32.totalorder %s1194, 15
      %s1196 = scalar_select %p1195, %s1194, 15
      %s1197 = smul.addr %s1196, 8
      %s1198 = scalar_lea.vmem %s6, %s1197
      // Predicated region
      $region45: #{tpu_custom_call.1} parent=43 // pred_check
        %p1199 = pneg %p166
      $region46: #{tpu_custom_call.1} parent=43 // pred_check_branch
        %1201 = sbr.rel (%p1199) target = $region48
      $region47: #{tpu_custom_call.1} parent=43 // pred_region
        %s1202 = smul.u32 8, %s17
      $region48: #{tpu_custom_call.1} parent=43 // pred_fallthru
        _
    $region44: #{tpu_custom_call.1} parent=5 // pred_fallthru
      _
    %p1203 = scmp.le.s32.totalorder 2, %s12
    // Predicated region
    $region49: #{tpu_custom_call.1} parent=5 // pred_check
      %p1204 = pneg %p1203
    $region50: #{tpu_custom_call.1} parent=5 // pred_check_branch
      %1206 = sbr.rel (%p1204) target = $region52
    $region51: #{tpu_custom_call.1} parent=5 // pred_region
      %s1207 = ssub.s32 %s12, 2
      // Predicated region
      $region53: #{tpu_custom_call.1} parent=51 // pred_check
        %p1208 = pneg %p172
      $region54: #{tpu_custom_call.1} parent=51 // pred_check_branch
        %1210 = sbr.rel (%p1208) target = $region56
      $region55: #{tpu_custom_call.1} parent=51 // pred_region
        %s1211 = smul.u32 8, %s18
        %p1212 = scmp.lt.s32.totalorder %s1211, 15
        %s1213 = scalar_select %p1212, %s1211, 15
        %s1214 = smul.addr %s1213, 8
        %s1215 = scalar_lea.vmem %s6, %s1214
      $region56: #{tpu_custom_call.1} parent=51 // pred_fallthru
        _
    $region52: #{tpu_custom_call.1} parent=5 // pred_fallthru
      _
  $region6: #{tpu_custom_call.1} parent=0 // loop_footer
    %s16 = sadd.s32 1, %s12
  $region7: #{tpu_custom_call.1} parent=0 // loop_footer_branch
    %11 = sbr.rel target = $region3
  $region8: #{tpu_custom_call.1} parent=0 // loop_exit
    _

</llo_original>
